<compile_context>
chip_gen: v5e
topology: v5e:2x2
jax: 0.10.0
libtpu: 0.0.40
codegen_flags: <defaults>
</compile_context>

<pallas_src>
import functools
import math

import jax
import jax.numpy as jnp
from jax.experimental import pallas as pl
from jax.experimental.pallas import tpu as pltpu


def _round_up(x, m):
    return ((x + m - 1) // m) * m


def _vmem_limit_bytes():
    # v5e/v6e have 128 MiB VMEM per TensorCore, v7x only 64 MiB -> leave headroom for the pipeline.
    try:
        cap = pltpu.get_tpu_info().vmem_capacity_bytes
    except Exception:
        cap = 64 * 1024 * 1024
    return int(min(48 * 1024 * 1024, cap * 0.45))


# ----------------------------- fused kernel ---------------------------------


def _make_fused_kernel(*, h, scale, eps, has_tr):
    def kernel(*refs):
        if has_tr:
            (xq_ref, xf_ref, wq_ref, bq_ref, wk_ref, bk_ref, wv_ref, bv_ref,
             wtr_ref, btr_ref, g_ref, bln_ref, o_ref, k_scr, v_scr) = refs
        else:
            (xq_ref, xf_ref, wq_ref, bq_ref, wk_ref, bk_ref, wv_ref, bv_ref,
             o_ref, k_scr, v_scr) = refs

        # --- Conv1d(k=1)+LayerNorm and K/V projections: once per batch, cached in VMEM scratch ---
        @pl.when(pl.program_id(1) == 0)
        def _():
            x_full = xf_ref[0]                                        # (N, C)
            if has_tr:
                # Conv1d(kernel=1) over the sequence dim == (M, N) @ (N, C), then LayerNorm over C.
                hid = jnp.dot(wtr_ref[...], x_full,
                              preferred_element_type=jnp.float32) + btr_ref[...]
                mean = jnp.mean(hid, axis=-1, keepdims=True)
                cent = hid - mean
                var = jnp.mean(cent * cent, axis=-1, keepdims=True)
                x_kv = (cent * jax.lax.rsqrt(var + eps) * g_ref[...] + bln_ref[...]
                        ).astype(k_scr.dtype)                         # (M, C)
            else:
                x_kv = x_full                                         # (M == N, C)
            k_scr[...] = (jnp.dot(x_kv, wk_ref[...], preferred_element_type=jnp.float32)
                          + bk_ref[...]).astype(k_scr.dtype)
            v_scr[...] = (jnp.dot(x_kv, wv_ref[...], preferred_element_type=jnp.float32)
                          + bv_ref[...]).astype(v_scr.dtype)

        # --- Q projection for this query-row tile ---
        q = (jnp.dot(xq_ref[0], wq_ref[...], preferred_element_type=jnp.float32)
             + bq_ref[...]).astype(k_scr.dtype)                       # (tq, C)
        k = k_scr[...]                                                # (M, C)
        v = v_scr[...]                                                # (M, C)
        d_k = q.shape[-1] // h

        # --- per-head scaled dot-product attention, heads re-concatenated lane-dense ---
        # TODO(synk): for d_k <= 16 a VPU broadcast-multiply + lane-reduce score path (or a
        #             block-diagonal K packing) would lift MXU utilization further.
        outs = []
        for hh in range(h):
            sl = slice(hh * d_k, (hh + 1) * d_k)
            s = jax.lax.dot_general(q[:, sl], k[:, sl], (((1,), (1,)), ((), ())),
                                    preferred_element_type=jnp.float32) * scale   # (tq, M)
            s = s - jnp.max(s, axis=-1, keepdims=True)
            p = jnp.exp(s)
            inv = pl.reciprocal(jnp.sum(p, axis=-1, keepdims=True), approx=True)
            p = (p * inv).astype(v.dtype)
            # TODO(synk): training-mode dropout on p_attn would use pltpu.prng_seed/prng_random_bits.
            outs.append(jnp.dot(p, v[:, sl], preferred_element_type=jnp.float32))
        o_ref[0] = jnp.concatenate(outs, axis=-1).astype(o_ref.dtype)

    return kernel


# ----------------------------- wrapper --------------------------------------


@functools.partial(jax.jit, static_argnames=("h", "tr", "compute_dtype", "max_q_tile"))
def multi_head_attention(x, params, *, h, tr, compute_dtype=None, max_q_tile=256):
    """x: (B, N, d_model) -> (B, N, d_model). Eval-mode forward (dropout = identity)."""
    B, N, C = x.shape
    d_k = C // h
    dtype = jnp.dtype(compute_dtype) if compute_dtype is not None else x.dtype
    out_dtype = x.dtype

    xc = x.astype(dtype)
    wq = params["wq"].astype(dtype)
    wk = params["wk"].astype(dtype)
    wv = params["wv"].astype(dtype)
    # biases / LayerNorm params stay f32: they are added onto the f32 MXU accumulators.
    bq = params["bq"].astype(jnp.float32).reshape(1, C)
    bk = params["bk"].astype(jnp.float32).reshape(1, C)
    bv = params["bv"].astype(jnp.float32).reshape(1, C)

    has_tr = tr > 1
    if has_tr:
        w_tr = params["w_tr"].astype(dtype)
        M = w_tr.shape[0]
        b_tr = params["b_tr"].astype(jnp.float32).reshape(M, 1)
        ln_g = params["ln_g"].astype(jnp.float32).reshape(1, C)
        ln_b = params["ln_b"].astype(jnp.float32).reshape(1, C)
    else:
        M = N

    tq = min(max_q_tile, _round_up(N, 8))
    n_q = pl.cdiv(N, tq)

    const = lambda bi, qi: (0, 0)
    in_specs = [
        pl.BlockSpec((1, tq, C), lambda bi, qi: (bi, qi, 0)),   # x rows for the Q projection
        pl.BlockSpec((1, N, C), lambda bi, qi: (bi, 0, 0)),     # full-sequence x (fetched once / batch)
        pl.BlockSpec((C, C), const), pl.BlockSpec((1, C), const),
        pl.BlockSpec((C, C), const), pl.BlockSpec((1, C), const),
        pl.BlockSpec((C, C), const), pl.BlockSpec((1, C), const),
    ]
    args = [xc, xc, wq, bq, wk, bk, wv, bv]
    if has_tr:
        in_specs += [pl.BlockSpec((M, N), const), pl.BlockSpec((M, 1), const),
                     pl.BlockSpec((1, C), const), pl.BlockSpec((1, C), const)]
        args += [w_tr, b_tr, ln_g, ln_b]

    itm = jnp.dtype(dtype).itemsize
    flops = (2 * B * N * C * C                         # Q projection
             + (2 * B * M * N * C if has_tr else 0)    # Conv1d(k=1)
             + 4 * B * M * C * C                       # K and V projections
             + 4 * B * N * M * C)                      # QK^T + P.V over all heads
    bytes_accessed = itm * (3 * B * N * C + 3 * C * C + (M * N if has_tr else 0))

    kernel = _make_fused_kernel(h=h, scale=1.0 / math.sqrt(d_k), eps=1e-5, has_tr=has_tr)

    return pl.pallas_call(
        kernel,
        out_shape=jax.ShapeDtypeStruct((B, N, C), out_dtype),
        grid_spec=pltpu.PrefetchScalarGridSpec(
            num_scalar_prefetch=0,
            grid=(B, n_q),
            in_specs=in_specs,
            out_specs=pl.BlockSpec((1, tq, C), lambda bi, qi: (bi, qi, 0)),
            scratch_shapes=[pltpu.VMEM((M, C), dtype),   # K cache (per batch)
                            pltpu.VMEM((M, C), dtype)],  # V cache (per batch)
        ),
        compiler_params=pltpu.CompilerParams(
            dimension_semantics=("parallel", "arbitrary"),
            vmem_limit_bytes=_vmem_limit_bytes(),
        ),
        cost_estimate=pl.CostEstimate(flops=int(flops), transcendentals=int(B * h * N * M),
                                      bytes_accessed=int(bytes_accessed)),
    )(*args)


# ----------------------------- test -----------------------------------------


if __name__ == "__main__":
    # Small shapes consistent with the module: h=4 heads, d_model=32, data_len == N == 8, tr=2.
    B, N, C, h, tr = 2, 8, 32, 4, 2
    d_k = C // h
    M = N // tr

    key = jax.random.PRNGKey(0)
    ks = jax.random.split(key, 11)
    x = jax.random.normal(ks[0], (B, N, C), dtype=jnp.float32)

    def lin_init(kw, kb, d_in, d_out):
        w = jax.random.normal(kw, (d_in, d_out), jnp.float32) / jnp.sqrt(float(d_in))
        b = 0.01 * jax.random.normal(kb, (d_out,), jnp.float32)
        return w, b

    wq, bq = lin_init(ks[1], ks[2], C, C)
    wk, bk = lin_init(ks[3], ks[4], C, C)
    wv, bv = lin_init(ks[5], ks[6], C, C)
    w_tr = jax.random.normal(ks[7], (M, N), jnp.float32) / jnp.sqrt(float(N))
    b_tr = 0.01 * jax.random.normal(ks[8], (M,), jnp.float32)
    ln_g = 1.0 + 0.1 * jax.random.normal(ks[9], (C,), jnp.float32)
    ln_b = 0.1 * jax.random.normal(ks[10], (C,), jnp.float32)

    params = dict(wq=wq, bq=bq, wk=wk, bk=bk, wv=wv, bv=bv,
                  w_tr=w_tr, b_tr=b_tr, ln_g=ln_g, ln_b=ln_b)

    out = multi_head_attention(x, params, h=h, tr=tr)
    jax.block_until_ready(out)
    assert out.shape == (B, N, C)

    # Pure-JAX reference (same eval-mode semantics), full-precision f32 matmuls.
    with jax.default_matmul_precision("highest"):
        q = x @ wq + bq
        x_ = jnp.einsum("mn,bnc->bmc", w_tr, x) + b_tr[None, :, None]
        mu = x_.mean(-1, keepdims=True)
        var = ((x_ - mu) ** 2).mean(-1, keepdims=True)
        x_ = (x_ - mu) / jnp.sqrt(var + 1e-5) * ln_g + ln_b
        kk = x_ @ wk + bk
        vv = x_ @ wv + bv
        qh = q.reshape(B, N, h, d_k).transpose(0, 2, 1, 3)
        kh = kk.reshape(B, M, h, d_k).transpose(0, 2, 1, 3)
        vh = vv.reshape(B, M, h, d_k).transpose(0, 2, 1, 3)
        s = jnp.einsum("bhnd,bhmd->bhnm", qh, kh) / math.sqrt(d_k)
        p = jax.nn.softmax(s, axis=-1)
        ref = jnp.einsum("bhnm,bhmd->bhnd", p, vh).transpose(0, 2, 1, 3).reshape(B, N, C)

    err = float(jnp.max(jnp.abs(out - ref)))
    assert err < 5e-3, f"f32 max abs error {err}"

    # bf16 compute path (2x MXU throughput on v6e/v7x, f32 accumulation) — looser tolerance.
    out_bf16 = multi_head_attention(x, params, h=h, tr=tr, compute_dtype=jnp.bfloat16)
    jax.block_until_ready(out_bf16)
    err_bf16 = float(jnp.max(jnp.abs(out_bf16.astype(jnp.float32) - ref)))
    assert err_bf16 < 1e-1, f"bf16 max abs error {err_bf16}"

    # tr == 1 branch (no Conv1d/LayerNorm; K/V projected directly from x).
    out_tr1 = multi_head_attention(x, params, h=h, tr=1)
    jax.block_until_ready(out_tr1)
    with jax.default_matmul_precision("highest"):
        kk1 = x @ wk + bk
        vv1 = x @ wv + bv
        kh1 = kk1.reshape(B, N, h, d_k).transpose(0, 2, 1, 3)
        vh1 = vv1.reshape(B, N, h, d_k).transpose(0, 2, 1, 3)
        s1 = jnp.einsum("bhnd,bhmd->bhnm", qh, kh1) / math.sqrt(d_k)
        p1 = jax.nn.softmax(s1, axis=-1)
        ref1 = jnp.einsum("bhnm,bhmd->bhnd", p1, vh1).transpose(0, 2, 1, 3).reshape(B, N, C)
    err1 = float(jnp.max(jnp.abs(out_tr1 - ref1)))
    assert err1 < 5e-3, f"tr=1 max abs error {err1}"

    print("KERNEL_OK")
</pallas_src>

<mosaic_0001>
module attributes {stable_mosaic.version = 11 : i64} {
  func.func @kernel(%arg0: i32, %arg1: i32, %arg2: memref<1x8x32xf32, #tpu.memory_space<vmem>>, %arg3: memref<1x8x32xf32, #tpu.memory_space<vmem>>, %arg4: memref<32x32xf32, #tpu.memory_space<vmem>>, %arg5: memref<1x32xf32, #tpu.memory_space<vmem>>, %arg6: memref<32x32xf32, #tpu.memory_space<vmem>>, %arg7: memref<1x32xf32, #tpu.memory_space<vmem>>, %arg8: memref<32x32xf32, #tpu.memory_space<vmem>>, %arg9: memref<1x32xf32, #tpu.memory_space<vmem>>, %arg10: memref<4x8xf32, #tpu.memory_space<vmem>>, %arg11: memref<4x1xf32, #tpu.memory_space<vmem>>, %arg12: memref<1x32xf32, #tpu.memory_space<vmem>>, %arg13: memref<1x32xf32, #tpu.memory_space<vmem>>, %arg14: memref<1x8x32xf32, #tpu.memory_space<vmem>>, %arg15: memref<4x32xf32, #tpu.memory_space<vmem>>, %arg16: memref<4x32xf32, #tpu.memory_space<vmem>>) attributes {dimension_semantics = [#tpu.dimension_semantics<parallel>, #tpu.dimension_semantics<arbitrary>], iteration_bounds = array<i64: 2, 1>, scalar_prefetch = 0 : i64, scratch_operands = 2 : i64, tpu.core_type = #tpu.core_type<tc>, window_params = [{transform_indices = @transform_0, window_bounds = array<i64: 1, 8, 32>}, {transform_indices = @transform_1, window_bounds = array<i64: 1, 8, 32>}, {pipeline_mode = #tpu.pipeline_mode<synchronous>, transform_indices = @transform_2, window_bounds = array<i64: 32, 32>}, {pipeline_mode = #tpu.pipeline_mode<synchronous>, transform_indices = @transform_3, window_bounds = array<i64: 1, 32>}, {pipeline_mode = #tpu.pipeline_mode<synchronous>, transform_indices = @transform_4, window_bounds = array<i64: 32, 32>}, {pipeline_mode = #tpu.pipeline_mode<synchronous>, transform_indices = @transform_5, window_bounds = array<i64: 1, 32>}, {pipeline_mode = #tpu.pipeline_mode<synchronous>, transform_indices = @transform_6, window_bounds = array<i64: 32, 32>}, {pipeline_mode = #tpu.pipeline_mode<synchronous>, transform_indices = @transform_7, window_bounds = array<i64: 1, 32>}, {pipeline_mode = #tpu.pipeline_mode<synchronous>, transform_indices = @transform_8, window_bounds = array<i64: 4, 8>}, {pipeline_mode = #tpu.pipeline_mode<synchronous>, transform_indices = @transform_9, window_bounds = array<i64: 4, 1>}, {pipeline_mode = #tpu.pipeline_mode<synchronous>, transform_indices = @transform_10, window_bounds = array<i64: 1, 32>}, {pipeline_mode = #tpu.pipeline_mode<synchronous>, transform_indices = @transform_11, window_bounds = array<i64: 1, 32>}, {transform_indices = @transform_12, window_bounds = array<i64: 1, 8, 32>}]} {
    %c0_i32 = arith.constant 0 : i32
    %0 = arith.cmpi eq, %arg1, %c0_i32 : i32
    %1 = arith.extui %0 : i1 to i32
    %c0_i32_0 = arith.constant 0 : i32
    %2 = arith.cmpi ne, %1, %c0_i32_0 : i32
    scf.if %2 {
      %c0_34 = arith.constant 0 : index
      %c0_35 = arith.constant 0 : index
      %c0_36 = arith.constant 0 : index
      %84 = vector.load %arg3[%c0_34, %c0_35, %c0_36] : memref<1x8x32xf32, #tpu.memory_space<vmem>>, vector<1x8x32xf32>
      %85 = vector.shape_cast %84 : vector<1x8x32xf32> to vector<8x32xf32>
      %c0_37 = arith.constant 0 : index
      %c0_38 = arith.constant 0 : index
      %86 = vector.load %arg10[%c0_37, %c0_38] : memref<4x8xf32, #tpu.memory_space<vmem>>, vector<4x8xf32>
      %cst_39 = arith.constant dense<0.000000e+00> : vector<4x32xf32>
      %87 = tpu.matmul %86, %85, %cst_39 {dimension_numbers = #tpu.dot_dimension_numbers<[1], [0], [0], [1], [0, 0, 1, 1], [], []>} : vector<4x8xf32>, vector<8x32xf32>, vector<4x32xf32> -> vector<4x32xf32>
      %c0_40 = arith.constant 0 : index
      %c0_41 = arith.constant 0 : index
      %88 = vector.load %arg11[%c0_40, %c0_41] : memref<4x1xf32, #tpu.memory_space<vmem>>, vector<4x1xf32>
      %89 = vector.broadcast %88 : vector<4x1xf32> to vector<4x32xf32>
      %90 = arith.addf %87, %89 : vector<4x32xf32>
      %cst_42 = arith.constant dense<0.000000e+00> : vector<4xf32>
      %91 = vector.multi_reduction <add>, %90, %cst_42 [1] : vector<4x32xf32> to vector<4xf32>
      %92 = vector.shape_cast %91 : vector<4xf32> to vector<4x1xf32>
      %cst_43 = arith.constant 3.200000e+01 : f32
      %93 = vector.broadcast %cst_43 : f32 to vector<4x1xf32>
      %94 = arith.divf %92, %93 : vector<4x1xf32>
      %95 = vector.broadcast %94 : vector<4x1xf32> to vector<4x32xf32>
      %96 = arith.subf %90, %95 : vector<4x32xf32>
      %97 = arith.mulf %96, %96 : vector<4x32xf32>
      %cst_44 = arith.constant dense<0.000000e+00> : vector<4xf32>
      %98 = vector.multi_reduction <add>, %97, %cst_44 [1] : vector<4x32xf32> to vector<4xf32>
      %99 = vector.shape_cast %98 : vector<4xf32> to vector<4x1xf32>
      %cst_45 = arith.constant 3.200000e+01 : f32
      %100 = vector.broadcast %cst_45 : f32 to vector<4x1xf32>
      %101 = arith.divf %99, %100 : vector<4x1xf32>
      %cst_46 = arith.constant 9.99999974E-6 : f32
      %102 = vector.broadcast %cst_46 : f32 to vector<4x1xf32>
      %103 = arith.addf %101, %102 : vector<4x1xf32>
      %104 = math.rsqrt %103 : vector<4x1xf32>
      %105 = vector.broadcast %104 : vector<4x1xf32> to vector<4x32xf32>
      %106 = arith.mulf %96, %105 : vector<4x32xf32>
      %c0_47 = arith.constant 0 : index
      %c0_48 = arith.constant 0 : index
      %107 = vector.load %arg12[%c0_47, %c0_48] : memref<1x32xf32, #tpu.memory_space<vmem>>, vector<1x32xf32>
      %108 = vector.broadcast %107 : vector<1x32xf32> to vector<4x32xf32>
      %109 = arith.mulf %106, %108 : vector<4x32xf32>
      %c0_49 = arith.constant 0 : index
      %c0_50 = arith.constant 0 : index
      %110 = vector.load %arg13[%c0_49, %c0_50] : memref<1x32xf32, #tpu.memory_space<vmem>>, vector<1x32xf32>
      %111 = vector.broadcast %110 : vector<1x32xf32> to vector<4x32xf32>
      %112 = arith.addf %109, %111 : vector<4x32xf32>
      %c0_51 = arith.constant 0 : index
      %c0_52 = arith.constant 0 : index
      %113 = vector.load %arg6[%c0_51, %c0_52] : memref<32x32xf32, #tpu.memory_space<vmem>>, vector<32x32xf32>
      %cst_53 = arith.constant dense<0.000000e+00> : vector<4x32xf32>
      %114 = tpu.matmul %112, %113, %cst_53 {dimension_numbers = #tpu.dot_dimension_numbers<[1], [0], [0], [1], [0, 0, 1, 1], [], []>} : vector<4x32xf32>, vector<32x32xf32>, vector<4x32xf32> -> vector<4x32xf32>
      %c0_54 = arith.constant 0 : index
      %c0_55 = arith.constant 0 : index
      %115 = vector.load %arg7[%c0_54, %c0_55] : memref<1x32xf32, #tpu.memory_space<vmem>>, vector<1x32xf32>
      %116 = vector.broadcast %115 : vector<1x32xf32> to vector<4x32xf32>
      %117 = arith.addf %114, %116 : vector<4x32xf32>
      %c0_56 = arith.constant 0 : index
      %c0_57 = arith.constant 0 : index
      %118 = vector.load %arg15[%c0_56, %c0_57] : memref<4x32xf32, #tpu.memory_space<vmem>>, vector<4x32xf32>
      tpu.vector_store %arg15[%c0_56, %c0_57], %117 {strides = array<i32>} : memref<4x32xf32, #tpu.memory_space<vmem>>, vector<4x32xf32>,
      %c0_58 = arith.constant 0 : index
      %c0_59 = arith.constant 0 : index
      %119 = vector.load %arg8[%c0_58, %c0_59] : memref<32x32xf32, #tpu.memory_space<vmem>>, vector<32x32xf32>
      %cst_60 = arith.constant dense<0.000000e+00> : vector<4x32xf32>
      %120 = tpu.matmul %112, %119, %cst_60 {dimension_numbers = #tpu.dot_dimension_numbers<[1], [0], [0], [1], [0, 0, 1, 1], [], []>} : vector<4x32xf32>, vector<32x32xf32>, vector<4x32xf32> -> vector<4x32xf32>
      %c0_61 = arith.constant 0 : index
      %c0_62 = arith.constant 0 : index
      %121 = vector.load %arg9[%c0_61, %c0_62] : memref<1x32xf32, #tpu.memory_space<vmem>>, vector<1x32xf32>
      %122 = vector.broadcast %121 : vector<1x32xf32> to vector<4x32xf32>
      %123 = arith.addf %120, %122 : vector<4x32xf32>
      %c0_63 = arith.constant 0 : index
      %c0_64 = arith.constant 0 : index
      %124 = vector.load %arg16[%c0_63, %c0_64] : memref<4x32xf32, #tpu.memory_space<vmem>>, vector<4x32xf32>
      tpu.vector_store %arg16[%c0_63, %c0_64], %123 {strides = array<i32>} : memref<4x32xf32, #tpu.memory_space<vmem>>, vector<4x32xf32>,
    } else {
    }
    %c0 = arith.constant 0 : index
    %c0_1 = arith.constant 0 : index
    %c0_2 = arith.constant 0 : index
    %3 = vector.load %arg2[%c0, %c0_1, %c0_2] : memref<1x8x32xf32, #tpu.memory_space<vmem>>, vector<1x8x32xf32>
    %4 = vector.shape_cast %3 : vector<1x8x32xf32> to vector<8x32xf32>
    %c0_3 = arith.constant 0 : index
    %c0_4 = arith.constant 0 : index
    %5 = vector.load %arg4[%c0_3, %c0_4] : memref<32x32xf32, #tpu.memory_space<vmem>>, vector<32x32xf32>
    %cst = arith.constant dense<0.000000e+00> : vector<8x32xf32>
    %6 = tpu.matmul %4, %5, %cst {dimension_numbers = #tpu.dot_dimension_numbers<[1], [0], [0], [1], [0, 0, 1, 1], [], []>} : vector<8x32xf32>, vector<32x32xf32>, vector<8x32xf32> -> vector<8x32xf32>
    %c0_5 = arith.constant 0 : index
    %c0_6 = arith.constant 0 : index
    %7 = vector.load %arg5[%c0_5, %c0_6] : memref<1x32xf32, #tpu.memory_space<vmem>>, vector<1x32xf32>
    %8 = vector.broadcast %7 : vector<1x32xf32> to vector<8x32xf32>
    %9 = arith.addf %6, %8 : vector<8x32xf32>
    %c0_7 = arith.constant 0 : index
    %c0_8 = arith.constant 0 : index
    %10 = vector.load %arg15[%c0_7, %c0_8] : memref<4x32xf32, #tpu.memory_space<vmem>>, vector<4x32xf32>
    %c0_9 = arith.constant 0 : index
    %c0_10 = arith.constant 0 : index
    %11 = vector.load %arg16[%c0_9, %c0_10] : memref<4x32xf32, #tpu.memory_space<vmem>>, vector<4x32xf32>
    %12 = vector.extract_strided_slice %9 {offsets = [0, 0], sizes = [8, 8], strides = [1, 1]} : vector<8x32xf32> to vector<8x8xf32>
    %13 = vector.extract_strided_slice %10 {offsets = [0, 0], sizes = [4, 8], strides = [1, 1]} : vector<4x32xf32> to vector<4x8xf32>
    %cst_11 = arith.constant dense<0.000000e+00> : vector<8x4xf32>
    %14 = tpu.matmul %12, %13, %cst_11 {dimension_numbers = #tpu.dot_dimension_numbers<[1], [1], [0], [0], [0, 0, 1, 0], [], []>} : vector<8x8xf32>, vector<4x8xf32>, vector<8x4xf32> -> vector<8x4xf32>
    %cst_12 = arith.constant 0.353553385 : f32
    %15 = vector.broadcast %cst_12 : f32 to vector<8x4xf32>
    %16 = arith.mulf %14, %15 : vector<8x4xf32>
    %cst_13 = arith.constant dense<0xFF800000> : vector<8xf32>
    %17 = vector.multi_reduction <maximumf>, %16, %cst_13 [1] : vector<8x4xf32> to vector<8xf32>
    %18 = vector.shape_cast %17 : vector<8xf32> to vector<8x1xf32>
    %19 = vector.broadcast %18 : vector<8x1xf32> to vector<8x4xf32>
    %20 = arith.subf %16, %19 : vector<8x4xf32>
    %21 = math.exp %20 : vector<8x4xf32>
    %cst_14 = arith.constant dense<0.000000e+00> : vector<8xf32>
    %22 = vector.multi_reduction <add>, %21, %cst_14 [1] : vector<8x4xf32> to vector<8xf32>
    %23 = vector.shape_cast %22 : vector<8xf32> to vector<8x1xf32>
    %24 = tpu.reciprocal %23 {approx = true} : vector<8x1xf32> -> vector<8x1xf32>
    %25 = vector.broadcast %24 : vector<8x1xf32> to vector<8x4xf32>
    %26 = arith.mulf %21, %25 : vector<8x4xf32>
    %27 = vector.extract_strided_slice %11 {offsets = [0, 0], sizes = [4, 8], strides = [1, 1]} : vector<4x32xf32> to vector<4x8xf32>
    %cst_15 = arith.constant dense<0.000000e+00> : vector<8x8xf32>
    %28 = tpu.matmul %26, %27, %cst_15 {dimension_numbers = #tpu.dot_dimension_numbers<[1], [0], [0], [1], [0, 0, 1, 1], [], []>} : vector<8x4xf32>, vector<4x8xf32>, vector<8x8xf32> -> vector<8x8xf32>
    %29 = vector.extract_strided_slice %9 {offsets = [0, 8], sizes = [8, 8], strides = [1, 1]} : vector<8x32xf32> to vector<8x8xf32>
    %30 = vector.extract_strided_slice %10 {offsets = [0, 8], sizes = [4, 8], strides = [1, 1]} : vector<4x32xf32> to vector<4x8xf32>
    %cst_16 = arith.constant dense<0.000000e+00> : vector<8x4xf32>
    %31 = tpu.matmul %29, %30, %cst_16 {dimension_numbers = #tpu.dot_dimension_numbers<[1], [1], [0], [0], [0, 0, 1, 0], [], []>} : vector<8x8xf32>, vector<4x8xf32>, vector<8x4xf32> -> vector<8x4xf32>
    %cst_17 = arith.constant 0.353553385 : f32
    %32 = vector.broadcast %cst_17 : f32 to vector<8x4xf32>
    %33 = arith.mulf %31, %32 : vector<8x4xf32>
    %cst_18 = arith.constant dense<0xFF800000> : vector<8xf32>
    %34 = vector.multi_reduction <maximumf>, %33, %cst_18 [1] : vector<8x4xf32> to vector<8xf32>
    %35 = vector.shape_cast %34 : vector<8xf32> to vector<8x1xf32>
    %36 = vector.broadcast %35 : vector<8x1xf32> to vector<8x4xf32>
    %37 = arith.subf %33, %36 : vector<8x4xf32>
    %38 = math.exp %37 : vector<8x4xf32>
    %cst_19 = arith.constant dense<0.000000e+00> : vector<8xf32>
    %39 = vector.multi_reduction <add>, %38, %cst_19 [1] : vector<8x4xf32> to vector<8xf32>
    %40 = vector.shape_cast %39 : vector<8xf32> to vector<8x1xf32>
    %41 = tpu.reciprocal %40 {approx = true} : vector<8x1xf32> -> vector<8x1xf32>
    %42 = vector.broadcast %41 : vector<8x1xf32> to vector<8x4xf32>
    %43 = arith.mulf %38, %42 : vector<8x4xf32>
    %44 = vector.extract_strided_slice %11 {offsets = [0, 8], sizes = [4, 8], strides = [1, 1]} : vector<4x32xf32> to vector<4x8xf32>
    %cst_20 = arith.constant dense<0.000000e+00> : vector<8x8xf32>
    %45 = tpu.matmul %43, %44, %cst_20 {dimension_numbers = #tpu.dot_dimension_numbers<[1], [0], [0], [1], [0, 0, 1, 1], [], []>} : vector<8x4xf32>, vector<4x8xf32>, vector<8x8xf32> -> vector<8x8xf32>
    %46 = vector.extract_strided_slice %9 {offsets = [0, 16], sizes = [8, 8], strides = [1, 1]} : vector<8x32xf32> to vector<8x8xf32>
    %47 = vector.extract_strided_slice %10 {offsets = [0, 16], sizes = [4, 8], strides = [1, 1]} : vector<4x32xf32> to vector<4x8xf32>
    %cst_21 = arith.constant dense<0.000000e+00> : vector<8x4xf32>
    %48 = tpu.matmul %46, %47, %cst_21 {dimension_numbers = #tpu.dot_dimension_numbers<[1], [1], [0], [0], [0, 0, 1, 0], [], []>} : vector<8x8xf32>, vector<4x8xf32>, vector<8x4xf32> -> vector<8x4xf32>
    %cst_22 = arith.constant 0.353553385 : f32
    %49 = vector.broadcast %cst_22 : f32 to vector<8x4xf32>
    %50 = arith.mulf %48, %49 : vector<8x4xf32>
    %cst_23 = arith.constant dense<0xFF800000> : vector<8xf32>
    %51 = vector.multi_reduction <maximumf>, %50, %cst_23 [1] : vector<8x4xf32> to vector<8xf32>
    %52 = vector.shape_cast %51 : vector<8xf32> to vector<8x1xf32>
    %53 = vector.broadcast %52 : vector<8x1xf32> to vector<8x4xf32>
    %54 = arith.subf %50, %53 : vector<8x4xf32>
    %55 = math.exp %54 : vector<8x4xf32>
    %cst_24 = arith.constant dense<0.000000e+00> : vector<8xf32>
    %56 = vector.multi_reduction <add>, %55, %cst_24 [1] : vector<8x4xf32> to vector<8xf32>
    %57 = vector.shape_cast %56 : vector<8xf32> to vector<8x1xf32>
    %58 = tpu.reciprocal %57 {approx = true} : vector<8x1xf32> -> vector<8x1xf32>
    %59 = vector.broadcast %58 : vector<8x1xf32> to vector<8x4xf32>
    %60 = arith.mulf %55, %59 : vector<8x4xf32>
    %61 = vector.extract_strided_slice %11 {offsets = [0, 16], sizes = [4, 8], strides = [1, 1]} : vector<4x32xf32> to vector<4x8xf32>
    %cst_25 = arith.constant dense<0.000000e+00> : vector<8x8xf32>
    %62 = tpu.matmul %60, %61, %cst_25 {dimension_numbers = #tpu.dot_dimension_numbers<[1], [0], [0], [1], [0, 0, 1, 1], [], []>} : vector<8x4xf32>, vector<4x8xf32>, vector<8x8xf32> -> vector<8x8xf32>
    %63 = vector.extract_strided_slice %9 {offsets = [0, 24], sizes = [8, 8], strides = [1, 1]} : vector<8x32xf32> to vector<8x8xf32>
    %64 = vector.extract_strided_slice %10 {offsets = [0, 24], sizes = [4, 8], strides = [1, 1]} : vector<4x32xf32> to vector<4x8xf32>
    %cst_26 = arith.constant dense<0.000000e+00> : vector<8x4xf32>
    %65 = tpu.matmul %63, %64, %cst_26 {dimension_numbers = #tpu.dot_dimension_numbers<[1], [1], [0], [0], [0, 0, 1, 0], [], []>} : vector<8x8xf32>, vector<4x8xf32>, vector<8x4xf32> -> vector<8x4xf32>
    %cst_27 = arith.constant 0.353553385 : f32
    %66 = vector.broadcast %cst_27 : f32 to vector<8x4xf32>
    %67 = arith.mulf %65, %66 : vector<8x4xf32>
    %cst_28 = arith.constant dense<0xFF800000> : vector<8xf32>
    %68 = vector.multi_reduction <maximumf>, %67, %cst_28 [1] : vector<8x4xf32> to vector<8xf32>
    %69 = vector.shape_cast %68 : vector<8xf32> to vector<8x1xf32>
    %70 = vector.broadcast %69 : vector<8x1xf32> to vector<8x4xf32>
    %71 = arith.subf %67, %70 : vector<8x4xf32>
    %72 = math.exp %71 : vector<8x4xf32>
    %cst_29 = arith.constant dense<0.000000e+00> : vector<8xf32>
    %73 = vector.multi_reduction <add>, %72, %cst_29 [1] : vector<8x4xf32> to vector<8xf32>
    %74 = vector.shape_cast %73 : vector<8xf32> to vector<8x1xf32>
    %75 = tpu.reciprocal %74 {approx = true} : vector<8x1xf32> -> vector<8x1xf32>
    %76 = vector.broadcast %75 : vector<8x1xf32> to vector<8x4xf32>
    %77 = arith.mulf %72, %76 : vector<8x4xf32>
    %78 = vector.extract_strided_slice %11 {offsets = [0, 24], sizes = [4, 8], strides = [1, 1]} : vector<4x32xf32> to vector<4x8xf32>
    %cst_30 = arith.constant dense<0.000000e+00> : vector<8x8xf32>
    %79 = tpu.matmul %77, %78, %cst_30 {dimension_numbers = #tpu.dot_dimension_numbers<[1], [0], [0], [1], [0, 0, 1, 1], [], []>} : vector<8x4xf32>, vector<4x8xf32>, vector<8x8xf32> -> vector<8x8xf32>
    %80 = tpu.concatenate %28, %45, %62, %79 in 1 : vector<8x8xf32>, vector<8x8xf32>, vector<8x8xf32>, vector<8x8xf32> -> vector<8x32xf32>
    %c0_31 = arith.constant 0 : index
    %c0_32 = arith.constant 0 : index
    %c0_33 = arith.constant 0 : index
    %81 = vector.load %arg14[%c0_31, %c0_32, %c0_33] : memref<1x8x32xf32, #tpu.memory_space<vmem>>, vector<1x8x32xf32>
    %82 = vector.shape_cast %81 : vector<1x8x32xf32> to vector<8x32xf32>
    %83 = vector.shape_cast %80 : vector<8x32xf32> to vector<1x8x32xf32>
    tpu.vector_store %arg14[%c0_31, %c0_32, %c0_33], %83 {strides = array<i32>} : memref<1x8x32xf32, #tpu.memory_space<vmem>>, vector<1x8x32xf32>,
    return
  }
  func.func @transform_0(%arg0: i32, %arg1: i32) -> (i32, i32, i32) {
    %c0_i32 = arith.constant 0 : i32
    %c0_i32_0 = arith.constant 0 : i32
    return %arg0, %arg1, %c0_i32 : i32, i32, i32
  }
  func.func @transform_1(%arg0: i32, %arg1: i32) -> (i32, i32, i32) {
    %c0_i32 = arith.constant 0 : i32
    %c0_i32_0 = arith.constant 0 : i32
    %c0_i32_1 = arith.constant 0 : i32
    return %arg0, %c0_i32, %c0_i32_0 : i32, i32, i32
  }
  func.func @transform_2(%arg0: i32, %arg1: i32) -> (i32, i32) {
    %c0_i32 = arith.constant 0 : i32
    %c0_i32_0 = arith.constant 0 : i32
    %c0_i32_1 = arith.constant 0 : i32
    return %c0_i32, %c0_i32_0 : i32, i32
  }
  func.func @transform_3(%arg0: i32, %arg1: i32) -> (i32, i32) {
    %c0_i32 = arith.constant 0 : i32
    %c0_i32_0 = arith.constant 0 : i32
    %c0_i32_1 = arith.constant 0 : i32
    return %c0_i32, %c0_i32_0 : i32, i32
  }
  func.func @transform_4(%arg0: i32, %arg1: i32) -> (i32, i32) {
    %c0_i32 = arith.constant 0 : i32
    %c0_i32_0 = arith.constant 0 : i32
    %c0_i32_1 = arith.constant 0 : i32
    return %c0_i32, %c0_i32_0 : i32, i32
  }
  func.func @transform_5(%arg0: i32, %arg1: i32) -> (i32, i32) {
    %c0_i32 = arith.constant 0 : i32
    %c0_i32_0 = arith.constant 0 : i32
    %c0_i32_1 = arith.constant 0 : i32
    return %c0_i32, %c0_i32_0 : i32, i32
  }
  func.func @transform_6(%arg0: i32, %arg1: i32) -> (i32, i32) {
    %c0_i32 = arith.constant 0 : i32
    %c0_i32_0 = arith.constant 0 : i32
    %c0_i32_1 = arith.constant 0 : i32
    return %c0_i32, %c0_i32_0 : i32, i32
  }
  func.func @transform_7(%arg0: i32, %arg1: i32) -> (i32, i32) {
    %c0_i32 = arith.constant 0 : i32
    %c0_i32_0 = arith.constant 0 : i32
    %c0_i32_1 = arith.constant 0 : i32
    return %c0_i32, %c0_i32_0 : i32, i32
  }
  func.func @transform_8(%arg0: i32, %arg1: i32) -> (i32, i32) {
    %c0_i32 = arith.constant 0 : i32
    %c0_i32_0 = arith.constant 0 : i32
    %c0_i32_1 = arith.constant 0 : i32
    return %c0_i32, %c0_i32_0 : i32, i32
  }
  func.func @transform_9(%arg0: i32, %arg1: i32) -> (i32, i32) {
    %c0_i32 = arith.constant 0 : i32
    %c0_i32_0 = arith.constant 0 : i32
    %c0_i32_1 = arith.constant 0 : i32
    return %c0_i32, %c0_i32_0 : i32, i32
  }
  func.func @transform_10(%arg0: i32, %arg1: i32) -> (i32, i32) {
    %c0_i32 = arith.constant 0 : i32
    %c0_i32_0 = arith.constant 0 : i32
    %c0_i32_1 = arith.constant 0 : i32
    return %c0_i32, %c0_i32_0 : i32, i32
  }
  func.func @transform_11(%arg0: i32, %arg1: i32) -> (i32, i32) {
    %c0_i32 = arith.constant 0 : i32
    %c0_i32_0 = arith.constant 0 : i32
    %c0_i32_1 = arith.constant 0 : i32
    return %c0_i32, %c0_i32_0 : i32, i32
  }
  func.func @transform_12(%arg0: i32, %arg1: i32) -> (i32, i32, i32) {
    %c0_i32 = arith.constant 0 : i32
    %c0_i32_0 = arith.constant 0 : i32
    return %arg0, %arg1, %c0_i32 : i32, i32, i32
  }
}

</mosaic_0001>

<llo_original>
// kernel: multi_head_attention.1
$region0: #{multi_head_attention.1}
  #allocation0 [shape = 'u32[]', space=smem, size = 0x4, offset = 0x4, fixed_abs, tag = 'smem constant byte address 0x4 - core index']
  #allocation1 [shape = 'u32[72,128]{1,0:T(1,128)}', space=vmem, size = 0x9000, scoped, tag = 'internal scratch']
  #allocation2 [shape = 'f32[4,32]{1,0:T(4,128)}', space=vmem, size = 0x800, scoped, tag = 'scratch operand']
  #allocation3 [shape = 'f32[4,32]{1,0:T(4,128)}', space=vmem, size = 0x800, scoped, tag = 'scratch operand']
  %s0 = inlined_call_operand.hbm [shape: f32[2,8,32], index: 0, kind: input, shape index: {}, may-alias: {0,1}]
  %s1 = inlined_call_operand.hbm [shape: f32[2,8,32], index: 1, kind: input, shape index: {}, may-alias: {0,1}]
  %s2 = inlined_call_operand.hbm [shape: f32[32,32], index: 2, kind: input, shape index: {}]
  %s3 = inlined_call_operand.vmem [shape: f32[1,32], index: 3, kind: input, shape index: {}]
  %s4 = inlined_call_operand.hbm [shape: f32[32,32], index: 4, kind: input, shape index: {}]
  %s5 = inlined_call_operand.vmem [shape: f32[1,32], index: 5, kind: input, shape index: {}]
  %s6 = inlined_call_operand.hbm [shape: f32[32,32], index: 6, kind: input, shape index: {}]
  %s7 = inlined_call_operand.vmem [shape: f32[1,32], index: 7, kind: input, shape index: {}]
  %s8 = inlined_call_operand.vmem [shape: f32[4,8], index: 8, kind: input, shape index: {}]
  %s9 = inlined_call_operand.vmem [shape: f32[4,1], index: 9, kind: input, shape index: {}]
  %s10 = inlined_call_operand.vmem [shape: f32[1,32], index: 10, kind: input, shape index: {}]
  %s11 = inlined_call_operand.vmem [shape: f32[1,32], index: 11, kind: input, shape index: {}]
  %s12 = inlined_call_operand.hbm [shape: f32[2,8,32], index: 12, kind: output, shape index: {}]
  %s13 = sld [smem:[#allocation0]]
  $region105: #{multi_head_attention.1} parent=0
    _
  %s15 = ssub.s32 1, %s13
  %s16 = scalar_select 0, %s15, %s13
  $region1: #{multi_head_attention.1} parent=0
    #allocation4 [shape = 'u8[8192]{0}', space=vmem, size = 0x2000, scoped, tag = 'input window, operand 0']
    #allocation5 [shape = 's32[2]{0}', space=sflag, size = 0x8, scoped, tag = 'scoped memory for multi_head_attention.1']
    #allocation6 [shape = 's32[2]{0}', space=sflag, size = 0x8, scoped, tag = 'scoped memory for multi_head_attention.1']
    #allocation7 [shape = 'u8[8192]{0}', space=vmem, size = 0x2000, scoped, tag = 'input window, operand 1']
    #allocation8 [shape = 's32[2]{0}', space=sflag, size = 0x8, scoped, tag = 'scoped memory for multi_head_attention.1']
    #allocation9 [shape = 'u8[16384]{0}', space=vmem, size = 0x4000, scoped, tag = 'input window, operand 2, single buffered']
    #allocation10 [shape = 'u8[16384]{0}', space=vmem, size = 0x4000, scoped, tag = 'input window, operand 4, single buffered']
    #allocation11 [shape = 's32[1]{0}', space=sflag, size = 0x4, scoped, tag = 'scoped memory for multi_head_attention.1']
    #allocation12 [shape = 'u8[16384]{0}', space=vmem, size = 0x4000, scoped, tag = 'input window, operand 6, single buffered']
    #allocation13 [shape = 'u8[8192]{0}', space=vmem, size = 0x2000, scoped, tag = 'output window, operand 0']
    %17 = vsyncpa [#allocation5], 0
    %s18 = scalar_lea.sflag [#allocation5], 1
    %19 = vsyncpa %s18, 0
    %20 = vsyncpa [#allocation8], 0
    %s21 = scalar_lea.sflag [#allocation8], 1
    %22 = vsyncpa %s21, 0
    %23 = vsyncpa [#allocation11], 0
    %24 = vsyncpa [#allocation6], 0
    %s25 = scalar_lea.sflag [#allocation6], 1
    %26 = vsyncpa %s25, 0
    loop: start=0, step=1, limit=4
    $region2: #{multi_head_attention.1} parent=1 // loop_pre_header
      _
    $region3: #{multi_head_attention.1} parent=1 // loop_header
      %s28 = sphi 0, %s32
      %p29 = scmp.ge.s32.totalorder %s28, 4
      %s35 = sphi 0, %s47
      %s36 = sphi 0, %s43
      %s37 = sphi 0, %s35
      %s38 = sphi 0, %s36
      %s39 = sphi 0, %s37
      %s40 = sphi 0, %s38
      %s52 = sphi 0, %s54
      %s55 = sphi 0, %s52
      %s56 = sphi 0, %s55
      %s72 = sphi 0, %s56
      %s78 = sphi 0, %s80
      %s81 = sphi 0, %s78
      %s82 = sphi 0, %s81
      %s98 = sphi 0, %s82
      %s102 = sphi 0, %s102
      %s104 = sphi 0, %s102
      %s105 = sphi 0, %s104
      %s119 = sphi 0, %s105
      %s123 = sphi 0, %s123
      %s125 = sphi 0, %s123
      %s126 = sphi 0, %s125
      %s140 = sphi 0, %s126
      %s144 = sphi 0, %s144
      %s146 = sphi 0, %s144
      %s147 = sphi 0, %s146
      %s161 = sphi 0, %s147
      %s165 = sphi 0, %s165
      %s167 = sphi 0, %s165
      %s168 = sphi 0, %s167
      %s182 = sphi 0, %s168
      %s186 = sphi 0, %s186
      %s188 = sphi 0, %s186
      %s189 = sphi 0, %s188
      %s203 = sphi 0, %s189
      %s207 = sphi 0, %s207
      %s209 = sphi 0, %s207
      %s210 = sphi 0, %s209
      %s224 = sphi 0, %s210
      %s228 = sphi 0, %s228
      %s230 = sphi 0, %s228
      %s231 = sphi 0, %s230
      %s245 = sphi 0, %s231
      %s249 = sphi 0, %s249
      %s251 = sphi 0, %s249
      %s252 = sphi 0, %s251
      %s266 = sphi 0, %s252
      %s270 = sphi 0, %s270
      %s272 = sphi 0, %s270
      %s273 = sphi 0, %s272
      %s287 = sphi 0, %s273
      %s291 = sphi 0, %s291
      %s293 = sphi 0, %s291
      %s294 = sphi 0, %s293
      %s308 = sphi 0, %s294
      %s316 = sphi 0, %s318
      %s319 = sphi 0, %s316
      %s320 = sphi 0, %s319
      %s336 = sphi 0, %s320
    $region4: #{multi_head_attention.1} parent=1 // loop_header_branch
      %31 = sbr.rel (%p29) target = $region8
    $region5: #{multi_head_attention.1} parent=1 // loop_body
      %s33 = ssub.s32 %s28, 1
      %s34 = ssub.s32 %s28, 2
      %s41 = sadd.s32 1, %s36
      %p42 = scmp.ge.s32.totalorder %s41, 1
      %s43 = scalar_select %p42, 0, %s41
      %s44 = sadd.s32 1, %s35
      %s45 = scalar_select %p42, %s44, %s35
      %p46 = scmp.ge.s32.totalorder %s45, 2
      %s47 = scalar_select %p46, 0, %s45
      %s48 = ssub.s32 %s35, %s47
      %s49 = ssub.s32 %s36, %s43
      %s50 = sor.u32 %s48, %s49
      %p51 = scmp.eq.s32.totalorder %s50, 0
      %s53 = sadd.s32 %s52, 1
      %s54 = scalar_select %p51, %s52, %s53
      %p57 = pneg %p51
      %p58 = scmp.eq.s32.totalorder %s28, 1
      %p59 = por %p57, %p58
      %p60 = scmp.ne.s32.totalorder %s52, %s55
      %p61 = scmp.eq.s32.totalorder %s28, 0
      %p62 = por %p60, %p61
      %p63 = scmp.ne.s32.totalorder %s52, %s55
      %p64 = scmp.eq.s32.totalorder %s33, 1
      %p65 = por %p63, %p64
      %p66 = scmp.ne.s32.totalorder %s55, %s56
      %p67 = scmp.eq.s32.totalorder %s33, 0
      %p68 = por %p66, %p67
      %p69 = scmp.ne.s32.totalorder %s55, %s56
      %p70 = scmp.eq.s32.totalorder %s34, 1
      %p71 = por %p69, %p70
      %p73 = scmp.ne.s32.totalorder %s56, %s72
      %p74 = scmp.eq.s32.totalorder %s34, 0
      %p75 = por %p73, %p74
      %s76 = ssub.s32 %s35, %s47
      %p77 = scmp.eq.s32.totalorder %s76, 0
      %s79 = sadd.s32 %s78, 1
      %s80 = scalar_select %p77, %s78, %s79
      %p83 = pneg %p77
      %p84 = scmp.eq.s32.totalorder %s28, 1
      %p85 = por %p83, %p84
      %p86 = scmp.ne.s32.totalorder %s78, %s81
      %p87 = scmp.eq.s32.totalorder %s28, 0
      %p88 = por %p86, %p87
      %p89 = scmp.ne.s32.totalorder %s78, %s81
      %p90 = scmp.eq.s32.totalorder %s33, 1
      %p91 = por %p89, %p90
      %p92 = scmp.ne.s32.totalorder %s81, %s82
      %p93 = scmp.eq.s32.totalorder %s33, 0
      %p94 = por %p92, %p93
      %p95 = scmp.ne.s32.totalorder %s81, %s82
      %p96 = scmp.eq.s32.totalorder %s34, 1
      %p97 = por %p95, %p96
      %p99 = scmp.ne.s32.totalorder %s82, %s98
      %p100 = scmp.eq.s32.totalorder %s34, 0
      %p101 = por %p99, %p100
      %s103 = sadd.s32 %s102, 1
      %p106 = scmp.eq.s32.totalorder %s28, 1
      %p107 = scmp.ne.s32.totalorder %s102, %s104
      %p108 = scmp.eq.s32.totalorder %s28, 0
      %p109 = por %p107, %p108
      %p110 = scmp.ne.s32.totalorder %s102, %s104
      %p111 = scmp.eq.s32.totalorder %s33, 1
      %p112 = por %p110, %p111
      %p113 = scmp.ne.s32.totalorder %s104, %s105
      %p114 = scmp.eq.s32.totalorder %s33, 0
      %p115 = por %p113, %p114
      %p116 = scmp.ne.s32.totalorder %s104, %s105
      %p117 = scmp.eq.s32.totalorder %s34, 1
      %p118 = por %p116, %p117
      %p120 = scmp.ne.s32.totalorder %s105, %s119
      %p121 = scmp.eq.s32.totalorder %s34, 0
      %p122 = por %p120, %p121
      %s124 = sadd.s32 %s123, 1
      %p127 = scmp.eq.s32.totalorder %s28, 1
      %p128 = scmp.ne.s32.totalorder %s123, %s125
      %p129 = scmp.eq.s32.totalorder %s28, 0
      %p130 = por %p128, %p129
      %p131 = scmp.ne.s32.totalorder %s123, %s125
      %p132 = scmp.eq.s32.totalorder %s33, 1
      %p133 = por %p131, %p132
      %p134 = scmp.ne.s32.totalorder %s125, %s126
      %p135 = scmp.eq.s32.totalorder %s33, 0
      %p136 = por %p134, %p135
      %p137 = scmp.ne.s32.totalorder %s125, %s126
      %p138 = scmp.eq.s32.totalorder %s34, 1
      %p139 = por %p137, %p138
      %p141 = scmp.ne.s32.totalorder %s126, %s140
      %p142 = scmp.eq.s32.totalorder %s34, 0
      %p143 = por %p141, %p142
      %s145 = sadd.s32 %s144, 1
      %p148 = scmp.eq.s32.totalorder %s28, 1
      %p149 = scmp.ne.s32.totalorder %s144, %s146
      %p150 = scmp.eq.s32.totalorder %s28, 0
      %p151 = por %p149, %p150
      %p152 = scmp.ne.s32.totalorder %s144, %s146
      %p153 = scmp.eq.s32.totalorder %s33, 1
      %p154 = por %p152, %p153
      %p155 = scmp.ne.s32.totalorder %s146, %s147
      %p156 = scmp.eq.s32.totalorder %s33, 0
      %p157 = por %p155, %p156
      %p158 = scmp.ne.s32.totalorder %s146, %s147
      %p159 = scmp.eq.s32.totalorder %s34, 1
      %p160 = por %p158, %p159
      %p162 = scmp.ne.s32.totalorder %s147, %s161
      %p163 = scmp.eq.s32.totalorder %s34, 0
      %p164 = por %p162, %p163
      %s166 = sadd.s32 %s165, 1
      %p169 = scmp.eq.s32.totalorder %s28, 1
      %p170 = scmp.ne.s32.totalorder %s165, %s167
      %p171 = scmp.eq.s32.totalorder %s28, 0
      %p172 = por %p170, %p171
      %p173 = scmp.ne.s32.totalorder %s165, %s167
      %p174 = scmp.eq.s32.totalorder %s33, 1
      %p175 = por %p173, %p174
      %p176 = scmp.ne.s32.totalorder %s167, %s168
      %p177 = scmp.eq.s32.totalorder %s33, 0
      %p178 = por %p176, %p177
      %p179 = scmp.ne.s32.totalorder %s167, %s168
      %p180 = scmp.eq.s32.totalorder %s34, 1
      %p181 = por %p179, %p180
      %p183 = scmp.ne.s32.totalorder %s168, %s182
      %p184 = scmp.eq.s32.totalorder %s34, 0
      %p185 = por %p183, %p184
      %s187 = sadd.s32 %s186, 1
      %p190 = scmp.eq.s32.totalorder %s28, 1
      %p191 = scmp.ne.s32.totalorder %s186, %s188
      %p192 = scmp.eq.s32.totalorder %s28, 0
      %p193 = por %p191, %p192
      %p194 = scmp.ne.s32.totalorder %s186, %s188
      %p195 = scmp.eq.s32.totalorder %s33, 1
      %p196 = por %p194, %p195
      %p197 = scmp.ne.s32.totalorder %s188, %s189
      %p198 = scmp.eq.s32.totalorder %s33, 0
      %p199 = por %p197, %p198
      %p200 = scmp.ne.s32.totalorder %s188, %s189
      %p201 = scmp.eq.s32.totalorder %s34, 1
      %p202 = por %p200, %p201
      %p204 = scmp.ne.s32.totalorder %s189, %s203
      %p205 = scmp.eq.s32.totalorder %s34, 0
      %p206 = por %p204, %p205
      %s208 = sadd.s32 %s207, 1
      %p211 = scmp.eq.s32.totalorder %s28, 1
      %p212 = scmp.ne.s32.totalorder %s207, %s209
      %p213 = scmp.eq.s32.totalorder %s28, 0
      %p214 = por %p212, %p213
      %p215 = scmp.ne.s32.totalorder %s207, %s209
      %p216 = scmp.eq.s32.totalorder %s33, 1
      %p217 = por %p215, %p216
      %p218 = scmp.ne.s32.totalorder %s209, %s210
      %p219 = scmp.eq.s32.totalorder %s33, 0
      %p220 = por %p218, %p219
      %p221 = scmp.ne.s32.totalorder %s209, %s210
      %p222 = scmp.eq.s32.totalorder %s34, 1
      %p223 = por %p221, %p222
      %p225 = scmp.ne.s32.totalorder %s210, %s224
      %p226 = scmp.eq.s32.totalorder %s34, 0
      %p227 = por %p225, %p226
      %s229 = sadd.s32 %s228, 1
      %p232 = scmp.eq.s32.totalorder %s28, 1
      %p233 = scmp.ne.s32.totalorder %s228, %s230
      %p234 = scmp.eq.s32.totalorder %s28, 0
      %p235 = por %p233, %p234
      %p236 = scmp.ne.s32.totalorder %s228, %s230
      %p237 = scmp.eq.s32.totalorder %s33, 1
      %p238 = por %p236, %p237
      %p239 = scmp.ne.s32.totalorder %s230, %s231
      %p240 = scmp.eq.s32.totalorder %s33, 0
      %p241 = por %p239, %p240
      %p242 = scmp.ne.s32.totalorder %s230, %s231
      %p243 = scmp.eq.s32.totalorder %s34, 1
      %p244 = por %p242, %p243
      %p246 = scmp.ne.s32.totalorder %s231, %s245
      %p247 = scmp.eq.s32.totalorder %s34, 0
      %p248 = por %p246, %p247
      %s250 = sadd.s32 %s249, 1
      %p253 = scmp.eq.s32.totalorder %s28, 1
      %p254 = scmp.ne.s32.totalorder %s249, %s251
      %p255 = scmp.eq.s32.totalorder %s28, 0
      %p256 = por %p254, %p255
      %p257 = scmp.ne.s32.totalorder %s249, %s251
      %p258 = scmp.eq.s32.totalorder %s33, 1
      %p259 = por %p257, %p258
      %p260 = scmp.ne.s32.totalorder %s251, %s252
      %p261 = scmp.eq.s32.totalorder %s33, 0
      %p262 = por %p260, %p261
      %p263 = scmp.ne.s32.totalorder %s251, %s252
      %p264 = scmp.eq.s32.totalorder %s34, 1
      %p265 = por %p263, %p264
      %p267 = scmp.ne.s32.totalorder %s252, %s266
      %p268 = scmp.eq.s32.totalorder %s34, 0
      %p269 = por %p267, %p268
      %s271 = sadd.s32 %s270, 1
      %p274 = scmp.eq.s32.totalorder %s28, 1
      %p275 = scmp.ne.s32.totalorder %s270, %s272
      %p276 = scmp.eq.s32.totalorder %s28, 0
      %p277 = por %p275, %p276
      %p278 = scmp.ne.s32.totalorder %s270, %s272
      %p279 = scmp.eq.s32.totalorder %s33, 1
      %p280 = por %p278, %p279
      %p281 = scmp.ne.s32.totalorder %s272, %s273
      %p282 = scmp.eq.s32.totalorder %s33, 0
      %p283 = por %p281, %p282
      %p284 = scmp.ne.s32.totalorder %s272, %s273
      %p285 = scmp.eq.s32.totalorder %s34, 1
      %p286 = por %p284, %p285
      %p288 = scmp.ne.s32.totalorder %s273, %s287
      %p289 = scmp.eq.s32.totalorder %s34, 0
      %p290 = por %p288, %p289
      %s292 = sadd.s32 %s291, 1
      %p295 = scmp.eq.s32.totalorder %s28, 1
      %p296 = scmp.ne.s32.totalorder %s291, %s293
      %p297 = scmp.eq.s32.totalorder %s28, 0
      %p298 = por %p296, %p297
      %p299 = scmp.ne.s32.totalorder %s291, %s293
      %p300 = scmp.eq.s32.totalorder %s33, 1
      %p301 = por %p299, %p300
      %p302 = scmp.ne.s32.totalorder %s293, %s294
      %p303 = scmp.eq.s32.totalorder %s33, 0
      %p304 = por %p302, %p303
      %p305 = scmp.ne.s32.totalorder %s293, %s294
      %p306 = scmp.eq.s32.totalorder %s34, 1
      %p307 = por %p305, %p306
      %p309 = scmp.ne.s32.totalorder %s294, %s308
      %p310 = scmp.eq.s32.totalorder %s34, 0
      %p311 = por %p309, %p310
      %s312 = ssub.s32 %s35, %s47
      %s313 = ssub.s32 %s36, %s43
      %s314 = sor.u32 %s312, %s313
      %p315 = scmp.eq.s32.totalorder %s314, 0
      %s317 = sadd.s32 %s316, 1
      %s318 = scalar_select %p315, %s316, %s317
      %p321 = pneg %p315
      %p322 = scmp.eq.s32.totalorder %s28, 1
      %p323 = por %p321, %p322
      %p324 = scmp.ne.s32.totalorder %s316, %s319
      %p325 = scmp.eq.s32.totalorder %s28, 0
      %p326 = por %p324, %p325
      %p327 = scmp.ne.s32.totalorder %s316, %s319
      %p328 = scmp.eq.s32.totalorder %s33, 1
      %p329 = por %p327, %p328
      %p330 = scmp.ne.s32.totalorder %s319, %s320
      %p331 = scmp.eq.s32.totalorder %s33, 0
      %p332 = por %p330, %p331
      %p333 = scmp.ne.s32.totalorder %s319, %s320
      %p334 = scmp.eq.s32.totalorder %s34, 1
      %p335 = por %p333, %p334
      %p337 = scmp.ne.s32.totalorder %s320, %s336
      %p338 = scmp.eq.s32.totalorder %s34, 0
      %p339 = por %p337, %p338
      %p340 = scmp.le.s32.totalorder 1, %s28
      %p341 = scmp.lt.s32.totalorder %s28, 3
      %p342 = pnand %p340, %p341
      %p343 = pneg %p342
      // Predicated region
      $region9: #{multi_head_attention.1} parent=5 // pred_check
        _
      $region10: #{multi_head_attention.1} parent=5 // pred_check_branch
        %345 = sbr.rel (%p342) target = $region12
      $region11: #{multi_head_attention.1} parent=5 // pred_region
        %s346 = ssub.s32 %s28, 1
        // Predicated region
        $region13: #{multi_head_attention.1} parent=11 // pred_check
          %p347 = pneg %p115
        $region14: #{multi_head_attention.1} parent=11 // pred_check_branch
          %349 = sbr.rel (%p347) target = $region16
        $region15: #{multi_head_attention.1} parent=11 // pred_region
          %351 = vsyncadd [#allocation8], 0
          %s352 = sshll.u32 %s2, 4
          %s353 = int_to_ptr.hbm [resolvable:$true] %s352
          %s354 = sshll.u32 [#allocation9], 4
          %s355 = int_to_ptr.vmem [resolvable:$true] %s354
          %360 = dma.hbm_to_vmem [thread:$0]  %s353, 512, %s355, [#allocation8], 128, 128, 8
        $region16: #{multi_head_attention.1} parent=11 // pred_fallthru
          _
        // Predicated region
        $region17: #{multi_head_attention.1} parent=11 // pred_check
          %p361 = pneg %p136
        $region18: #{multi_head_attention.1} parent=11 // pred_check_branch
          %363 = sbr.rel (%p361) target = $region20
        $region19: #{multi_head_attention.1} parent=11 // pred_region
          _
        $region20: #{multi_head_attention.1} parent=11 // pred_fallthru
          _
        // Predicated region
        $region21: #{multi_head_attention.1} parent=11 // pred_check
          %p364 = pneg %p157
        $region22: #{multi_head_attention.1} parent=11 // pred_check_branch
          %366 = sbr.rel (%p364) target = $region24
        $region23: #{multi_head_attention.1} parent=11 // pred_region
          %368 = vsyncadd [#allocation11], 0
          %s369 = sshll.u32 %s4, 4
          %s370 = int_to_ptr.hbm [resolvable:$true] %s369
          %s371 = sshll.u32 [#allocation10], 4
          %s372 = int_to_ptr.vmem [resolvable:$true] %s371
          %377 = dma.hbm_to_vmem [thread:$0]  %s370, 512, %s372, [#allocation11], 128, 128, 8
        $region24: #{multi_head_attention.1} parent=11 // pred_fallthru
          _
        // Predicated region
        $region25: #{multi_head_attention.1} parent=11 // pred_check
          %p378 = pneg %p178
        $region26: #{multi_head_attention.1} parent=11 // pred_check_branch
          %380 = sbr.rel (%p378) target = $region28
        $region27: #{multi_head_attention.1} parent=11 // pred_region
          _
        $region28: #{multi_head_attention.1} parent=11 // pred_fallthru
          _
        // Predicated region
        $region29: #{multi_head_attention.1} parent=11 // pred_check
          %p381 = pneg %p199
        $region30: #{multi_head_attention.1} parent=11 // pred_check_branch
          %383 = sbr.rel (%p381) target = $region32
        $region31: #{multi_head_attention.1} parent=11 // pred_region
          %385 = vsyncadd [#allocation11], 0
          %s386 = sshll.u32 %s6, 4
          %s387 = int_to_ptr.hbm [resolvable:$true] %s386
          %s388 = sshll.u32 [#allocation12], 4
          %s389 = int_to_ptr.vmem [resolvable:$true] %s388
          %394 = dma.hbm_to_vmem [thread:$0]  %s387, 512, %s389, [#allocation11], 128, 128, 8
        $region32: #{multi_head_attention.1} parent=11 // pred_fallthru
          _
        // Predicated region
        $region33: #{multi_head_attention.1} parent=11 // pred_check
          %p395 = pneg %p220
        $region34: #{multi_head_attention.1} parent=11 // pred_check_branch
          %397 = sbr.rel (%p395) target = $region36
        $region35: #{multi_head_attention.1} parent=11 // pred_region
          _
        $region36: #{multi_head_attention.1} parent=11 // pred_fallthru
          _
        // Predicated region
        $region37: #{multi_head_attention.1} parent=11 // pred_check
          %p398 = pneg %p241
        $region38: #{multi_head_attention.1} parent=11 // pred_check_branch
          %400 = sbr.rel (%p398) target = $region40
        $region39: #{multi_head_attention.1} parent=11 // pred_region
          _
        $region40: #{multi_head_attention.1} parent=11 // pred_fallthru
          _
        // Predicated region
        $region41: #{multi_head_attention.1} parent=11 // pred_check
          %p401 = pneg %p262
        $region42: #{multi_head_attention.1} parent=11 // pred_check_branch
          %403 = sbr.rel (%p401) target = $region44
        $region43: #{multi_head_attention.1} parent=11 // pred_region
          _
        $region44: #{multi_head_attention.1} parent=11 // pred_fallthru
          _
        // Predicated region
        $region45: #{multi_head_attention.1} parent=11 // pred_check
          %p404 = pneg %p283
        $region46: #{multi_head_attention.1} parent=11 // pred_check_branch
          %406 = sbr.rel (%p404) target = $region48
        $region47: #{multi_head_attention.1} parent=11 // pred_region
          _
        $region48: #{multi_head_attention.1} parent=11 // pred_fallthru
          _
        // Predicated region
        $region49: #{multi_head_attention.1} parent=11 // pred_check
          %p407 = pneg %p304
        $region50: #{multi_head_attention.1} parent=11 // pred_check_branch
          %409 = sbr.rel (%p407) target = $region52
        $region51: #{multi_head_attention.1} parent=11 // pred_region
          _
        $region52: #{multi_head_attention.1} parent=11 // pred_fallthru
          _
      $region12: #{multi_head_attention.1} parent=5 // pred_fallthru
        _
      %p410 = scmp.lt.s32.totalorder %s28, 2
      // Predicated region
      $region53: #{multi_head_attention.1} parent=5 // pred_check
        %p411 = pneg %p410
      $region54: #{multi_head_attention.1} parent=5 // pred_check_branch
        %413 = sbr.rel (%p411) target = $region56
      $region55: #{multi_head_attention.1} parent=5 // pred_region
        // Predicated region
        $region57: #{multi_head_attention.1} parent=55 // pred_check
          %p414 = pneg %p62
        $region58: #{multi_head_attention.1} parent=55 // pred_check_branch
          %416 = sbr.rel (%p414) target = $region60
        $region59: #{multi_head_attention.1} parent=55 // pred_region
          %s417 = sand.u32 %s52, 1
          %s418 = scalar_lea.sflag [#allocation5], %s417
          %s419 = sand.u32 %s52, 1
          %s420 = smul.addr %s419, 8
          %s421 = scalar_lea.vmem [#allocation4], %s420
          %423 = vsyncadd %s418, 0
          %s424 = sadd.s32 %s36, %s35
          %s425 = smul.addr %s424, 8
          %s426 = scalar_lea.hbm %s0, %s425
          %s428 = sshll.u32 %s426, 4
          %s429 = int_to_ptr.hbm [resolvable:$true] %s428
          %s430 = sshll.u32 %s421, 4
          %s431 = int_to_ptr.vmem [resolvable:$true] %s430
          %433 = dma.hbm_to_vmem [thread:$0]  %s429, 128, %s431, %s418
        $region60: #{multi_head_attention.1} parent=55 // pred_fallthru
          _
        // Predicated region
        $region61: #{multi_head_attention.1} parent=55 // pred_check
          %p434 = pneg %p88
        $region62: #{multi_head_attention.1} parent=55 // pred_check_branch
          %436 = sbr.rel (%p434) target = $region64
        $region63: #{multi_head_attention.1} parent=55 // pred_region
          %s437 = sand.u32 %s28, 1
          %s438 = scalar_lea.sflag [#allocation8], %s437
          %s439 = sand.u32 %s78, 1
          %s440 = smul.addr %s439, 8
          %s441 = scalar_lea.vmem [#allocation7], %s440
          %443 = vsyncadd %s438, 0
          %s444 = smul.addr %s35, 8
          %s445 = scalar_lea.hbm %s1, %s444
          %s447 = sshll.u32 %s445, 4
          %s448 = int_to_ptr.hbm [resolvable:$true] %s447
          %s449 = sshll.u32 %s441, 4
          %s450 = int_to_ptr.vmem [resolvable:$true] %s449
          %452 = dma.hbm_to_vmem [thread:$0]  %s448, 128, %s450, %s438
        $region64: #{multi_head_attention.1} parent=55 // pred_fallthru
          _
      $region56: #{multi_head_attention.1} parent=5 // pred_fallthru
        _
      %p453 = scmp.le.s32.totalorder 1, %s28
      %p454 = scmp.lt.s32.totalorder %s28, 3
      %p455 = pnand %p453, %p454
      %p456 = pneg %p455
      // Predicated region
      $region65: #{multi_head_attention.1} parent=5 // pred_check
        _
      $region66: #{multi_head_attention.1} parent=5 // pred_check_branch
        %458 = sbr.rel (%p455) target = $region68
      $region67: #{multi_head_attention.1} parent=5 // pred_region
        %s459 = ssub.s32 %s28, 1
        %s460 = sand.u32 %s55, 1
        %s461 = scalar_lea.sflag [#allocation5], %s460
        %s462 = sand.u32 %s55, 1
        %s463 = smul.addr %s462, 8
        %s464 = scalar_lea.vmem [#allocation4], %s463
        // Predicated region
        $region69: #{multi_head_attention.1} parent=67 // pred_check
          %p465 = pneg %p68
        $region70: #{multi_head_attention.1} parent=67 // pred_check_branch
          %467 = sbr.rel (%p465) target = $region72
        $region71: #{multi_head_attention.1} parent=67 // pred_region
          %469 = dma.done %s461, 128
        $region72: #{multi_head_attention.1} parent=67 // pred_fallthru
          _
        %s470 = sand.u32 %s33, 1
        %s471 = scalar_lea.sflag [#allocation8], %s470
        %s472 = sand.u32 %s81, 1
        %s473 = smul.addr %s472, 8
        %s474 = scalar_lea.vmem [#allocation7], %s473
        // Predicated region
        $region73: #{multi_head_attention.1} parent=67 // pred_check
          %p475 = pneg %p94
        $region74: #{multi_head_attention.1} parent=67 // pred_check_branch
          %477 = sbr.rel (%p475) target = $region76
        $region75: #{multi_head_attention.1} parent=67 // pred_region
          %479 = dma.done %s471, 128
        $region76: #{multi_head_attention.1} parent=67 // pred_fallthru
          _
        // Predicated region
        $region77: #{multi_head_attention.1} parent=67 // pred_check
          %p480 = pneg %p115
        $region78: #{multi_head_attention.1} parent=67 // pred_check_branch
          %482 = sbr.rel (%p480) target = $region80
        $region79: #{multi_head_attention.1} parent=67 // pred_region
          %484 = dma.done [#allocation8], 512
        $region80: #{multi_head_attention.1} parent=67 // pred_fallthru
          _
        // Predicated region
        $region81: #{multi_head_attention.1} parent=67 // pred_check
          %p485 = pneg %p157
        $region82: #{multi_head_attention.1} parent=67 // pred_check_branch
          %487 = sbr.rel (%p485) target = $region84
        $region83: #{multi_head_attention.1} parent=67 // pred_region
          %489 = dma.done [#allocation11], 512
        $region84: #{multi_head_attention.1} parent=67 // pred_fallthru
          _
        // Predicated region
        $region85: #{multi_head_attention.1} parent=67 // pred_check
          %p490 = pneg %p199
        $region86: #{multi_head_attention.1} parent=67 // pred_check_branch
          %492 = sbr.rel (%p490) target = $region88
        $region87: #{multi_head_attention.1} parent=67 // pred_region
          %494 = dma.done [#allocation11], 512
        $region88: #{multi_head_attention.1} parent=67 // pred_fallthru
          _
        %s495 = sand.u32 %s55, 1
        %s496 = scalar_lea.sflag [#allocation5], %s495
        %s497 = sand.u32 %s55, 1
        %s498 = smul.addr %s497, 8
        %s499 = scalar_lea.vmem [#allocation4], %s498
        %p500 = pneg %p68
        %p501 = pneg %p65
        %s502 = sand.u32 %s33, 1
        %s503 = scalar_lea.sflag [#allocation8], %s502
        %s504 = sand.u32 %s81, 1
        %s505 = smul.addr %s504, 8
        %s506 = scalar_lea.vmem [#allocation7], %s505
        %p507 = pneg %p94
        %p508 = pneg %p91
        %p509 = pneg %p115
        %p510 = pneg %p112
        %p511 = pneg %p136
        %p512 = pneg %p133
        %p513 = pneg %p157
        %p514 = pneg %p154
        %p515 = pneg %p178
        %p516 = pneg %p175
        %p517 = pneg %p199
        %p518 = pneg %p196
        %p519 = pneg %p220
        %p520 = pneg %p217
        %p521 = pneg %p241
        %p522 = pneg %p238
        %p523 = pneg %p262
        %p524 = pneg %p259
        %p525 = pneg %p283
        %p526 = pneg %p280
        %p527 = pneg %p304
        %p528 = pneg %p301
        %p529 = pneg %p332
        %p530 = pneg %p329
        %s531 = sand.u32 %s319, 1
        %s532 = scalar_lea.sflag [#allocation6], %s531
        %s533 = sand.u32 %s319, 1
        %s534 = smul.addr %s533, 8
        %s535 = scalar_lea.vmem [#allocation13], %s534
        %p536 = scmp.eq.s32.totalorder %s38, 0
        // Predicated region
        $region89: #{multi_head_attention.1} parent=67 // pred_check
          %p537 = pneg %p536
        $region90: #{multi_head_attention.1} parent=67 // pred_check_branch
          %539 = sbr.rel (%p537) target = $region92
        $region91: #{multi_head_attention.1} parent=67 // pred_region
          %v540 = vld [vmem:[%s474] sm:$0xff]
          %v541 = vld [vmem:[%s8] sm:$0xf]
          %v542 = vld [vmem:[%s9] sm:$0xf]
          %544 = vset.pattern.permute.xlu0 0
          %545 = vperm.xlu0 %544, %v542
          %v546 = vpop.permute.xlu0 %545
          %vm548 = vcmask 64512
          %v550 = vsel %vm548, %v541, 0
          %552 = vmatpush.msra.mxu0 0.0
          %553 = vmatpush.msra.mxu0 0.0
          %554 = vmatpush.msra.mxu0 0.0
          %555 = vmatpush.msra.mxu0 0.0
          %556 = vmatpush.msra.mxu0 0.0
          %557 = vmatpush.msra.mxu0 0.0
          %558 = vmatpush.msra.mxu0 0.0
          %559 = vmatpush.msra.mxu0 0.0
          %560 = vmatpush.msra.mxu0 0.0
          %561 = vmatpush.msra.mxu0 0.0
          %562 = vmatpush.msra.mxu0 0.0
          %563 = vmatpush.msra.mxu0 0.0
          %564 = vmatpush.msra.mxu0 0.0
          %565 = vmatpush.msra.mxu0 0.0
          %566 = vmatpush.msra.mxu0 0.0
          %567 = vmatpush.msra.mxu0 %v540
          %568 = vmatmul.f32.gmra.mxu0 %v550
          %v569 = vpop.f32.mrf.mxu0
          %v570 = vadd.f32 %v546, %v569
          %571 = vdwg.mxu0
          %vm572 = vcmask 257024
          %v573 = vsel %vm572, %v570, 0.0
          %574 = vadd.xlane.f32.xlu0 %v573
          %v575 = vpop.xlane.xlu0 %574
          %v576 = vrcp.pop 32.0
          %v577 = vmul.f32 32.0, %v576
          %v578 = vsub.f32 1.0, %v577
          %v579 = vmul.f32 %v576, %v578
          %v580 = vadd.f32 %v576, %v579
          %vm581 = vweird.f32 %v576
          %v582 = vsel %vm581, %v576, %v580
          %v583 = vmul.f32 %v575, %v582
          %v584 = vsub.f32 %v570, %v583
          %v585 = vmul.f32 %v584, %v584
          %v586 = vsel %vm572, %v585, 0.0
          %587 = vadd.xlane.f32.xlu0 %v586
          %v588 = vpop.xlane.xlu0 %587
          %v589 = vmul.f32 %v588, %v582
          %v590 = vadd.f32 %v589, 1e-05
          %v591 = vrsqrt.pop %v590
          %v592 = vmul.f32 %v591, %v590
          %v593 = vmul.f32 %v592, %v591
          %v594 = vmul.f32 0.5, %v593
          %v595 = vsub.f32 1.5, %v594
          %v596 = vmul.f32 %v591, %v595
          %vm597 = vweird.f32 %v590
          %vm598 = vweird.f32 %v591
          %vm599 = vmor %vm597, %vm598
          %v600 = vsel %vm599, %v591, %v596
          %v601 = vmul.f32 %v584, %v600
          %v602 = vld [vmem:[%s10] sm:$0x1]
          %v604 = vperm.slane %v602, 0
          %v606 = vmul.f32 %v601, %v604
          %v607 = vld [vmem:[%s11] sm:$0x1]
          %v609 = vperm.slane %v607, 0
          %v611 = vadd.f32 %v606, %v609
          %v612 = vld [vmem:[#allocation10] sm:$0xff]
          %v613 = vld [vmem:[#allocation10 + $0x8] sm:$0xff]
          %v614 = vld [vmem:[#allocation10 + $0x10] sm:$0xff]
          %v615 = vld [vmem:[#allocation10 + $0x18] sm:$0xff]
          %v616 = vld [vmem:[%s5] sm:$0x1]
          %v618 = vperm.slane %v616, 0
          %vm620 = vcmask 261120
          %v622 = vsel %vm620, %v611, 0
          %624 = vmatpush.msra.mxu0 0.0
          %625 = vmatpush.msra.mxu0 0.0
          %626 = vmatpush.msra.mxu0 0.0
          %627 = vmatpush.msra.mxu0 0.0
          %628 = vmatpush.msra.mxu0 0.0
          %629 = vmatpush.msra.mxu0 0.0
          %630 = vmatpush.msra.mxu0 0.0
          %631 = vmatpush.msra.mxu0 0.0
          %632 = vmatpush.msra.mxu0 0.0
          %633 = vmatpush.msra.mxu0 0.0
          %634 = vmatpush.msra.mxu0 0.0
          %635 = vmatpush.msra.mxu0 0.0
          %636 = vmatpush.msra.mxu0 %v615
          %637 = vmatpush.msra.mxu0 %v614
          %638 = vmatpush.msra.mxu0 %v613
          %639 = vmatpush.msra.mxu0 %v612
          %640 = vmatmul.f32.gmra.mxu0 %v622
          %v641 = vpop.f32.mrf.mxu0
          %v642 = vadd.f32 %v618, %v641
          %643 = vdwg.mxu0
          %644 = vst.msk [vmem:[#allocation2] sm:$0xf] %vm572, %v642
          %v645 = vld [vmem:[#allocation12] sm:$0xff]
          %v646 = vld [vmem:[#allocation12 + $0x8] sm:$0xff]
          %v647 = vld [vmem:[#allocation12 + $0x10] sm:$0xff]
          %v648 = vld [vmem:[#allocation12 + $0x18] sm:$0xff]
          %v649 = vld [vmem:[%s7] sm:$0x1]
          %v651 = vperm.slane %v649, 0
          %653 = vmatpush.msra.mxu0 0.0
          %654 = vmatpush.msra.mxu0 0.0
          %655 = vmatpush.msra.mxu0 0.0
          %656 = vmatpush.msra.mxu0 0.0
          %657 = vmatpush.msra.mxu0 0.0
          %658 = vmatpush.msra.mxu0 0.0
          %659 = vmatpush.msra.mxu0 0.0
          %660 = vmatpush.msra.mxu0 0.0
          %661 = vmatpush.msra.mxu0 0.0
          %662 = vmatpush.msra.mxu0 0.0
          %663 = vmatpush.msra.mxu0 0.0
          %664 = vmatpush.msra.mxu0 0.0
          %665 = vmatpush.msra.mxu0 %v648
          %666 = vmatpush.msra.mxu0 %v647
          %667 = vmatpush.msra.mxu0 %v646
          %668 = vmatpush.msra.mxu0 %v645
          %669 = vmatmul.f32.gmra.mxu0 %v622
          %v670 = vpop.f32.mrf.mxu0
          %v671 = vadd.f32 %v651, %v670
          %672 = vdwg.mxu0
          %673 = vst.msk [vmem:[#allocation3] sm:$0xf] %vm572, %v671
        $region92: #{multi_head_attention.1} parent=67 // pred_fallthru
          _
        %v674 = vld [vmem:[%s464] sm:$0xff]
        %v675 = vld [vmem:[#allocation9] sm:$0xff]
        %v676 = vld [vmem:[#allocation9 + $0x8] sm:$0xff]
        %v677 = vld [vmem:[#allocation9 + $0x10] sm:$0xff]
        %v678 = vld [vmem:[#allocation9 + $0x18] sm:$0xff]
        %v679 = vld [vmem:[%s3] sm:$0x1]
        %v681 = vperm.slane %v679, 0
        %vm683 = vcmask 261120
        %v685 = vsel %vm683, %v674, 0
        %687 = vmatpush.msra.mxu0 0.0
        %688 = vmatpush.msra.mxu0 0.0
        %689 = vmatpush.msra.mxu0 0.0
        %690 = vmatpush.msra.mxu0 0.0
        %691 = vmatpush.msra.mxu0 0.0
        %692 = vmatpush.msra.mxu0 0.0
        %693 = vmatpush.msra.mxu0 0.0
        %694 = vmatpush.msra.mxu0 0.0
        %695 = vmatpush.msra.mxu0 0.0
        %696 = vmatpush.msra.mxu0 0.0
        %697 = vmatpush.msra.mxu0 0.0
        %698 = vmatpush.msra.mxu0 0.0
        %699 = vmatpush.msra.mxu0 %v678
        %700 = vmatpush.msra.mxu0 %v677
        %701 = vmatpush.msra.mxu0 %v676
        %702 = vmatpush.msra.mxu0 %v675
        %703 = vmatmul.f32.gmra.mxu0 %v685
        %v704 = vpop.f32.mrf.mxu0
        %v705 = vadd.f32 %v681, %v704
        %706 = vdwg.mxu0
        %v707 = vld [vmem:[#allocation2] sm:$0xf]
        %v708 = vld [vmem:[#allocation3] sm:$0xf]
        %vm709 = vcmask 64512
        %v711 = vsel %vm709, %v705, 0
        %v714 = vsel %vm709, %v707, 0
        %716 = vmatpush.xpose.msra.mxu0 0.0
        %717 = vmatpush.xpose.msra.mxu0 0.0
        %718 = vmatpush.xpose.msra.mxu0 0.0
        %719 = vmatpush.xpose.msra.mxu0 0.0
        %720 = vmatpush.xpose.msra.mxu0 0.0
        %721 = vmatpush.xpose.msra.mxu0 0.0
        %722 = vmatpush.xpose.msra.mxu0 0.0
        %723 = vmatpush.xpose.msra.mxu0 0.0
        %724 = vmatpush.xpose.msra.mxu0 0.0
        %725 = vmatpush.xpose.msra.mxu0 0.0
        %726 = vmatpush.xpose.msra.mxu0 0.0
        %727 = vmatpush.xpose.msra.mxu0 0.0
        %728 = vmatpush.xpose.msra.mxu0 0.0
        %729 = vmatpush.xpose.msra.mxu0 0.0
        %730 = vmatpush.xpose.msra.mxu0 0.0
        %731 = vmatpush.xpose.msra.mxu0 %v714
        %732 = vmatmul.f32.gmra.mxu0 %v711
        %v733 = vpop.f32.mrf.mxu0
        %v734 = vadd.f32 0.0, %v733
        %735 = vdwg.mxu0
        %v736 = vmul.f32 %v734, 0.35355338
        %vm737 = vcmask 31744
        %v738 = vsel %vm737, %v736, -inf
        %739 = vmax.xlane.f32.xlu0 %v738
        %v740 = vpop.xlane.xlu0 %739
        %v741 = vsub.f32 %v736, %v740
        %v742 = vmul.f32 %v741, 1.442695
        %v743 = vpow.pop %v742
        %v744 = vsel %vm737, %v743, 0.0
        %745 = vadd.xlane.f32.xlu0 %v744
        %v746 = vpop.xlane.xlu0 %745
        %v747 = vrcp.pop %v746
        %v748 = vmul.f32 %v743, %v747
        %v750 = vsel %vm737, %v748, 0
        %vm752 = vcmask 1043456
        %v754 = vsel %vm752, %v708, 0
        %756 = vmatpush.msra.mxu0 0.0
        %757 = vmatpush.msra.mxu0 0.0
        %758 = vmatpush.msra.mxu0 0.0
        %759 = vmatpush.msra.mxu0 0.0
        %760 = vmatpush.msra.mxu0 0.0
        %761 = vmatpush.msra.mxu0 0.0
        %762 = vmatpush.msra.mxu0 0.0
        %763 = vmatpush.msra.mxu0 0.0
        %764 = vmatpush.msra.mxu0 0.0
        %765 = vmatpush.msra.mxu0 0.0
        %766 = vmatpush.msra.mxu0 0.0
        %767 = vmatpush.msra.mxu0 0.0
        %768 = vmatpush.msra.mxu0 0.0
        %769 = vmatpush.msra.mxu0 0.0
        %770 = vmatpush.msra.mxu0 0.0
        %771 = vmatpush.msra.mxu0 %v754
        %772 = vmatmul.f32.gmra.mxu0 %v750
        %v773 = vpop.f32.mrf.mxu0
        %v774 = vadd.f32 0.0, %v773
        %775 = vdwg.mxu0
        %776 = vrot.lane.b32.xlu0 %v705, 120
        %v777 = vpop.permute.xlu0 %776
        %778 = vrot.lane.b32.xlu0 %v707, 120
        %v779 = vpop.permute.xlu0 %778
        %v780 = vsel %vm709, %v777, 0
        %v782 = vsel %vm709, %v779, 0
        %784 = vmatpush.xpose.msra.mxu0 0.0
        %785 = vmatpush.xpose.msra.mxu0 0.0
        %786 = vmatpush.xpose.msra.mxu0 0.0
        %787 = vmatpush.xpose.msra.mxu0 0.0
        %788 = vmatpush.xpose.msra.mxu0 0.0
        %789 = vmatpush.xpose.msra.mxu0 0.0
        %790 = vmatpush.xpose.msra.mxu0 0.0
        %791 = vmatpush.xpose.msra.mxu0 0.0
        %792 = vmatpush.xpose.msra.mxu0 0.0
        %793 = vmatpush.xpose.msra.mxu0 0.0
        %794 = vmatpush.xpose.msra.mxu0 0.0
        %795 = vmatpush.xpose.msra.mxu0 0.0
        %796 = vmatpush.xpose.msra.mxu0 0.0
        %797 = vmatpush.xpose.msra.mxu0 0.0
        %798 = vmatpush.xpose.msra.mxu0 0.0
        %799 = vmatpush.xpose.msra.mxu0 %v782
        %800 = vmatmul.f32.gmra.mxu0 %v780
        %v801 = vpop.f32.mrf.mxu0
        %v802 = vadd.f32 0.0, %v801
        %803 = vdwg.mxu0
        %v804 = vmul.f32 %v802, 0.35355338
        %v805 = vsel %vm737, %v804, -inf
        %806 = vmax.xlane.f32.xlu0 %v805
        %v807 = vpop.xlane.xlu0 %806
        %v808 = vsub.f32 %v804, %v807
        %v809 = vmul.f32 %v808, 1.442695
        %v810 = vpow.pop %v809
        %v811 = vsel %vm737, %v810, 0.0
        %812 = vadd.xlane.f32.xlu0 %v811
        %v813 = vpop.xlane.xlu0 %812
        %v814 = vrcp.pop %v813
        %v815 = vmul.f32 %v810, %v814
        %816 = vrot.lane.b32.xlu0 %v708, 120
        %v817 = vpop.permute.xlu0 %816
        %v819 = vsel %vm737, %v815, 0
        %v821 = vsel %vm752, %v817, 0
        %823 = vmatpush.msra.mxu0 0.0
        %824 = vmatpush.msra.mxu0 0.0
        %825 = vmatpush.msra.mxu0 0.0
        %826 = vmatpush.msra.mxu0 0.0
        %827 = vmatpush.msra.mxu0 0.0
        %828 = vmatpush.msra.mxu0 0.0
        %829 = vmatpush.msra.mxu0 0.0
        %830 = vmatpush.msra.mxu0 0.0
        %831 = vmatpush.msra.mxu0 0.0
        %832 = vmatpush.msra.mxu0 0.0
        %833 = vmatpush.msra.mxu0 0.0
        %834 = vmatpush.msra.mxu0 0.0
        %835 = vmatpush.msra.mxu0 0.0
        %836 = vmatpush.msra.mxu0 0.0
        %837 = vmatpush.msra.mxu0 0.0
        %838 = vmatpush.msra.mxu0 %v821
        %839 = vmatmul.f32.gmra.mxu0 %v819
        %v840 = vpop.f32.mrf.mxu0
        %v841 = vadd.f32 0.0, %v840
        %842 = vdwg.mxu0
        %843 = vrot.lane.b32.xlu0 %v705, 112
        %v844 = vpop.permute.xlu0 %843
        %845 = vrot.lane.b32.xlu0 %v707, 112
        %v846 = vpop.permute.xlu0 %845
        %v847 = vsel %vm709, %v844, 0
        %v849 = vsel %vm709, %v846, 0
        %851 = vmatpush.xpose.msra.mxu0 0.0
        %852 = vmatpush.xpose.msra.mxu0 0.0
        %853 = vmatpush.xpose.msra.mxu0 0.0
        %854 = vmatpush.xpose.msra.mxu0 0.0
        %855 = vmatpush.xpose.msra.mxu0 0.0
        %856 = vmatpush.xpose.msra.mxu0 0.0
        %857 = vmatpush.xpose.msra.mxu0 0.0
        %858 = vmatpush.xpose.msra.mxu0 0.0
        %859 = vmatpush.xpose.msra.mxu0 0.0
        %860 = vmatpush.xpose.msra.mxu0 0.0
        %861 = vmatpush.xpose.msra.mxu0 0.0
        %862 = vmatpush.xpose.msra.mxu0 0.0
        %863 = vmatpush.xpose.msra.mxu0 0.0
        %864 = vmatpush.xpose.msra.mxu0 0.0
        %865 = vmatpush.xpose.msra.mxu0 0.0
        %866 = vmatpush.xpose.msra.mxu0 %v849
        %867 = vmatmul.f32.gmra.mxu0 %v847
        %v868 = vpop.f32.mrf.mxu0
        %v869 = vadd.f32 0.0, %v868
        %870 = vdwg.mxu0
        %v871 = vmul.f32 %v869, 0.35355338
        %v872 = vsel %vm737, %v871, -inf
        %873 = vmax.xlane.f32.xlu0 %v872
        %v874 = vpop.xlane.xlu0 %873
        %v875 = vsub.f32 %v871, %v874
        %v876 = vmul.f32 %v875, 1.442695
        %v877 = vpow.pop %v876
        %v878 = vsel %vm737, %v877, 0.0
        %879 = vadd.xlane.f32.xlu0 %v878
        %v880 = vpop.xlane.xlu0 %879
        %v881 = vrcp.pop %v880
        %v882 = vmul.f32 %v877, %v881
        %883 = vrot.lane.b32.xlu0 %v708, 112
        %v884 = vpop.permute.xlu0 %883
        %v886 = vsel %vm737, %v882, 0
        %v888 = vsel %vm752, %v884, 0
        %890 = vmatpush.msra.mxu0 0.0
        %891 = vmatpush.msra.mxu0 0.0
        %892 = vmatpush.msra.mxu0 0.0
        %893 = vmatpush.msra.mxu0 0.0
        %894 = vmatpush.msra.mxu0 0.0
        %895 = vmatpush.msra.mxu0 0.0
        %896 = vmatpush.msra.mxu0 0.0
        %897 = vmatpush.msra.mxu0 0.0
        %898 = vmatpush.msra.mxu0 0.0
        %899 = vmatpush.msra.mxu0 0.0
        %900 = vmatpush.msra.mxu0 0.0
        %901 = vmatpush.msra.mxu0 0.0
        %902 = vmatpush.msra.mxu0 0.0
        %903 = vmatpush.msra.mxu0 0.0
        %904 = vmatpush.msra.mxu0 0.0
        %905 = vmatpush.msra.mxu0 %v888
        %906 = vmatmul.f32.gmra.mxu0 %v886
        %v907 = vpop.f32.mrf.mxu0
        %v908 = vadd.f32 0.0, %v907
        %909 = vdwg.mxu0
        %910 = vrot.lane.b32.xlu0 %v705, 104
        %v911 = vpop.permute.xlu0 %910
        %912 = vrot.lane.b32.xlu0 %v707, 104
        %v913 = vpop.permute.xlu0 %912
        %v914 = vsel %vm709, %v911, 0
        %v916 = vsel %vm709, %v913, 0
        %918 = vmatpush.xpose.msra.mxu0 0.0
        %919 = vmatpush.xpose.msra.mxu0 0.0
        %920 = vmatpush.xpose.msra.mxu0 0.0
        %921 = vmatpush.xpose.msra.mxu0 0.0
        %922 = vmatpush.xpose.msra.mxu0 0.0
        %923 = vmatpush.xpose.msra.mxu0 0.0
        %924 = vmatpush.xpose.msra.mxu0 0.0
        %925 = vmatpush.xpose.msra.mxu0 0.0
        %926 = vmatpush.xpose.msra.mxu0 0.0
        %927 = vmatpush.xpose.msra.mxu0 0.0
        %928 = vmatpush.xpose.msra.mxu0 0.0
        %929 = vmatpush.xpose.msra.mxu0 0.0
        %930 = vmatpush.xpose.msra.mxu0 0.0
        %931 = vmatpush.xpose.msra.mxu0 0.0
        %932 = vmatpush.xpose.msra.mxu0 0.0
        %933 = vmatpush.xpose.msra.mxu0 %v916
        %934 = vmatmul.f32.gmra.mxu0 %v914
        %v935 = vpop.f32.mrf.mxu0
        %v936 = vadd.f32 0.0, %v935
        %937 = vdwg.mxu0
        %v938 = vmul.f32 %v936, 0.35355338
        %v939 = vsel %vm737, %v938, -inf
        %940 = vmax.xlane.f32.xlu0 %v939
        %v941 = vpop.xlane.xlu0 %940
        %v942 = vsub.f32 %v938, %v941
        %v943 = vmul.f32 %v942, 1.442695
        %v944 = vpow.pop %v943
        %v945 = vsel %vm737, %v944, 0.0
        %946 = vadd.xlane.f32.xlu0 %v945
        %v947 = vpop.xlane.xlu0 %946
        %v948 = vrcp.pop %v947
        %v949 = vmul.f32 %v944, %v948
        %950 = vrot.lane.b32.xlu0 %v708, 104
        %v951 = vpop.permute.xlu0 %950
        %v953 = vsel %vm737, %v949, 0
        %v955 = vsel %vm752, %v951, 0
        %957 = vmatpush.msra.mxu0 0.0
        %958 = vmatpush.msra.mxu0 0.0
        %959 = vmatpush.msra.mxu0 0.0
        %960 = vmatpush.msra.mxu0 0.0
        %961 = vmatpush.msra.mxu0 0.0
        %962 = vmatpush.msra.mxu0 0.0
        %963 = vmatpush.msra.mxu0 0.0
        %964 = vmatpush.msra.mxu0 0.0
        %965 = vmatpush.msra.mxu0 0.0
        %966 = vmatpush.msra.mxu0 0.0
        %967 = vmatpush.msra.mxu0 0.0
        %968 = vmatpush.msra.mxu0 0.0
        %969 = vmatpush.msra.mxu0 0.0
        %970 = vmatpush.msra.mxu0 0.0
        %971 = vmatpush.msra.mxu0 0.0
        %972 = vmatpush.msra.mxu0 %v955
        %973 = vmatmul.f32.gmra.mxu0 %v953
        %v974 = vpop.f32.mrf.mxu0
        %v975 = vadd.f32 0.0, %v974
        %976 = vdwg.mxu0
        %978 = vrot.lane.b32.xlu0 %v841, 8
        %v979 = vpop.permute.xlu0 %978
        %982 = vrot.lane.b32.xlu0 %v908, 16
        %v983 = vpop.permute.xlu0 %982
        %986 = vrot.lane.b32.xlu0 %v975, 24
        %v987 = vpop.permute.xlu0 %986
        %v989 = vsel %vm709, %v774, %v979
        %vm990 = vcmask 130048
        %v991 = vsel %vm990, %v989, %v983
        %vm992 = vcmask 195584
        %v993 = vsel %vm992, %v991, %v987
        %994 = vst.msk [vmem:[%s535] sm:$0xff] %vm683, %v993
        %s995 = sand.u32 %s319, 1
        %s996 = scalar_lea.sflag [#allocation6], %s995
        %s997 = sand.u32 %s319, 1
        %s998 = smul.addr %s997, 8
        %s999 = scalar_lea.vmem [#allocation13], %s998
        // Predicated region
        $region93: #{multi_head_attention.1} parent=67 // pred_check
          %p1000 = pneg %p329
        $region94: #{multi_head_attention.1} parent=67 // pred_check_branch
          %1002 = sbr.rel (%p1000) target = $region96
        $region95: #{multi_head_attention.1} parent=67 // pred_region
          %1004 = vsyncadd %s996, 0
          %s1005 = sadd.s32 %s38, %s37
          %s1006 = smul.addr %s1005, 8
          %s1007 = scalar_lea.hbm %s12, %s1006
          %s1009 = sshll.u32 %s999, 4
          %s1010 = int_to_ptr.vmem [resolvable:$true] %s1009
          %s1011 = sshll.u32 %s1007, 4
          %s1012 = int_to_ptr.hbm [resolvable:$true] %s1011
          %1014 = dma.vmem_to_hbm [thread:$0]  %s1010, 128, %s1012, %s996
        $region96: #{multi_head_attention.1} parent=67 // pred_fallthru
          _
      $region68: #{multi_head_attention.1} parent=5 // pred_fallthru
        _
      %p1015 = scmp.le.s32.totalorder 2, %s28
      // Predicated region
      $region97: #{multi_head_attention.1} parent=5 // pred_check
        %p1016 = pneg %p1015
      $region98: #{multi_head_attention.1} parent=5 // pred_check_branch
        %1018 = sbr.rel (%p1016) target = $region100
      $region99: #{multi_head_attention.1} parent=5 // pred_region
        %s1019 = ssub.s32 %s28, 2
        // Predicated region
        $region101: #{multi_head_attention.1} parent=99 // pred_check
          %p1020 = pneg %p335
        $region102: #{multi_head_attention.1} parent=99 // pred_check_branch
          %1022 = sbr.rel (%p1020) target = $region104
        $region103: #{multi_head_attention.1} parent=99 // pred_region
          %s1023 = sand.u32 %s320, 1
          %s1024 = scalar_lea.sflag [#allocation6], %s1023
          %s1025 = sand.u32 %s320, 1
          %s1026 = smul.addr %s1025, 8
          %s1027 = scalar_lea.vmem [#allocation13], %s1026
          %1029 = dma.done %s1024, 128
        $region104: #{multi_head_attention.1} parent=99 // pred_fallthru
          _
      $region100: #{multi_head_attention.1} parent=5 // pred_fallthru
        _
    $region6: #{multi_head_attention.1} parent=1 // loop_footer
      %s32 = sadd.s32 1, %s28
    $region7: #{multi_head_attention.1} parent=1 // loop_footer_branch
      %27 = sbr.rel target = $region3
    $region8: #{multi_head_attention.1} parent=1 // loop_exit
      _
    %1030 = vsyncpa [#allocation5], 1
    %s1031 = scalar_lea.sflag [#allocation5], 1
    %1032 = vsyncpa %s1031, 1
    %1033 = vsyncpa [#allocation8], 1
    %s1034 = scalar_lea.sflag [#allocation8], 1
    %1035 = vsyncpa %s1034, 1
    %1036 = vsyncpa [#allocation11], 1
    %1037 = vsyncpa [#allocation6], 1
    %s1038 = scalar_lea.sflag [#allocation6], 1
    %1039 = vsyncpa %s1038, 1

</llo_original>
